<compile_context>
chip_gen: v5e
topology: v5e:2x2
jax: 0.10.0
libtpu: 0.0.40
codegen_flags: <defaults>
</compile_context>

<pallas_src>
import functools
import math

import numpy as np
import jax
import jax.numpy as jnp
from jax.experimental import pallas as pl
from jax.experimental.pallas import tpu as pltpu


def _round_up(x, m):
    return (x + m - 1) // m * m


def _cat_kernel(logits_ref, tgt_ref, mflat_ref, fold_ref, classrow_ref, out_ref, *, temp):
    """One batch tile, batch on the lane axis.  (N = Nclass, CN = N*N, TB = tile)

      logits_ref   (N, TB)  f32  teacher logits, transposed (batch on lanes)
      tgt_ref      (1, TB)  i32  target class per column
      mflat_ref    (N, CN)  f32  mflat[j, c*N+i] = M_c[i, j]   (precomputed in wrapper)
      fold_ref     (CN, N)  f32  fold[c*N+i, j]  = (i == j)    (block identity)
      classrow_ref (CN, 1)  i32  class of packed row r (= r // N)
      out_ref      (N, TB)  f32  out[:, b] = M_{tgt[b]}^T @ p[:, b]
    """
    # --- teacher probabilities: softmax over classes (sublane axis), per column ---
    logits = logits_ref[...] * (1.0 / temp)
    cmax = jnp.max(logits, axis=0, keepdims=True)
    e = jnp.exp(logits - cmax)
    # Exact divide kept (not pl.reciprocal(approx=True)) to hold 1e-5 validation.
    p_t = e / jnp.sum(e, axis=0, keepdims=True)                               # (N, TB)

    # --- gather-by-matmul, lane-dense ---
    # replicate p with period N along sublanes: p_rep[c*N+i, b] = p_t[i, b]
    p_rep = jnp.dot(fold_ref[...], p_t, preferred_element_type=jnp.float32)   # (CN, TB)
    # keep only the target class's block per column
    q = jnp.where(classrow_ref[...] == tgt_ref[...], p_rep, 0.0)              # (CN, TB)
    # out[j, b] = sum_i M_{tgt[b]}[i, j] * p[i, b]
    out_ref[...] = jnp.dot(mflat_ref[...], q,
                           preferred_element_type=jnp.float32).astype(out_ref.dtype)
    # TODO(synk): if bundle dumps show vld/vst spill traffic at very large TB, split the
    # gather-by-matmul over 256-512-lane sub-chunks with lax.fori_loop(unroll=True)
    # instead of shrinking the grid tile.


def cat_model_forward(teacher_logit, target, weights, iscale, temp=1.0, block_b=None):
    """teacher_logit: (B, N); target: (B,) int; weights: (N, 2, N, D); iscale: (N,).
    Returns (B, N) f32."""
    B, N = teacher_logit.shape
    CN = N * N
    LANE = 128

    # ---- batch-independent transfer matrices, hoisted out of the grid (plain JAX) ----
    w0 = weights[:, 0, :, :].astype(jnp.float32)                 # (N, N, D)
    w1 = weights[:, 1, :, :].astype(jnp.float32)                 # (N, N, D)
    gram = jnp.einsum('cid,cjd->cij', w0, w1)                    # gram[c,i,j] = (W0_c @ W1_c^T)[i,j]
    a = gram + jnp.eye(N, dtype=jnp.float32)[None, :, :] * \
        iscale.astype(jnp.float32)[:, None, None]
    m = jax.nn.softmax(a, axis=1)                                # column softmax (torch dim=0), per-block stable
    # mflat_t[j, c*N + i] = M_c[i, j]
    mflat_t = jnp.transpose(m, (2, 0, 1)).reshape(N, CN)

    # ---- constant index helpers (built once; layout plumbing, not compute) ----
    r = np.arange(CN)
    fold = jnp.asarray((r[:, None] % N == np.arange(N)[None, :]).astype(np.float32))  # (CN, N)
    classrow = jnp.asarray((r // N).astype(np.int32)[:, None])                         # (CN, 1)

    # ---- lane-dense batch tiling: batch on the lane axis ----
    if block_b is None:
        block_b = 2048                        # step-overhead-bound workload: big tiles win
    block_b = min(int(block_b), 4096)         # v7x: 64 MiB VMEM headroom
    tb = _round_up(max(block_b, LANE), LANE)
    # keep >= 2 grid steps when the batch allows it (v7x: 2 TensorCores share the grid)
    half = _round_up(pl.cdiv(max(B, 1), 2), LANE)
    tb = max(LANE, min(tb, half))
    bp = _round_up(B, tb)

    logits_t = teacher_logit.astype(jnp.float32).T               # (N, B)
    tgt_row = target.astype(jnp.int32).reshape(1, B)              # (1, B)
    if bp != B:
        logits_t = jnp.pad(logits_t, ((0, 0), (0, bp - B)))
        tgt_row = jnp.pad(tgt_row, ((0, 0), (0, bp - B)))

    kernel = functools.partial(_cat_kernel, temp=float(temp))
    out_t = pl.pallas_call(
        kernel,
        out_shape=jax.ShapeDtypeStruct((N, bp), jnp.float32),
        grid=(bp // tb,),
        in_specs=[
            pl.BlockSpec((N, tb), lambda i: (0, i)),      # logits^T (lane-dense batch)
            pl.BlockSpec((1, tb), lambda i: (0, i)),      # targets
            pl.BlockSpec((N, CN), lambda i: (0, 0)),      # M_flat^T     (constant, ~4 KB)
            pl.BlockSpec((CN, N), lambda i: (0, 0)),      # fold         (constant, ~4 KB)
            pl.BlockSpec((CN, 1), lambda i: (0, 0)),      # class-of-row (constant)
        ],
        out_specs=pl.BlockSpec((N, tb), lambda i: (0, i)),
        compiler_params=pltpu.CompilerParams(
            dimension_semantics=("parallel",)),
    )(logits_t, tgt_row, mflat_t, fold, classrow)
    return out_t[:, :B].T


def _reference_forward(teacher_logit, target, weights, iscale, temp=1.0):
    """Pure-JAX reference (mirrors the PyTorch forward) for validation."""
    B, N = teacher_logit.shape
    p = jax.nn.softmax(teacher_logit / temp, axis=1)
    eye = jnp.eye(N, dtype=jnp.float32)
    out = jnp.zeros_like(p)
    for c in range(N):
        a = eye * iscale[c] + weights[c, 0] @ weights[c, 1].T
        m_c = jax.nn.softmax(a, axis=0)
        pm = p @ m_c
        out = jnp.where((target == c)[:, None], pm, out)
    return out


if __name__ == "__main__":
    Nclass = 10
    intrinsic_dim = 3
    B = 300         # non-multiple of the 128-lane tile -> exercises grid (3 steps) + padding
    temp = 1.0      # self.tempTrans default

    key = jax.random.PRNGKey(0)
    k_logit, k_tgt, k_w = jax.random.split(key, 3)

    # Deterministic parameter init mirroring __init__:
    #   kaiming_uniform_ on ones(Nclass, 2, intrinsic_dim) -> transpose(0, 1)
    bound = math.sqrt(6.0 / (2 * intrinsic_dim))
    weights = jax.random.uniform(
        k_w, (Nclass, Nclass, 2, intrinsic_dim),
        minval=-bound, maxval=bound, dtype=jnp.float32)
    weights = jnp.transpose(weights, (0, 2, 1, 3))        # (Nclass, 2, Nclass, D)
    iscale = jnp.ones((Nclass,), dtype=jnp.float32)       # self.Iscale

    teacher_logit = jax.random.normal(k_logit, (B, Nclass), dtype=jnp.float32)
    target = jax.random.randint(k_tgt, (B,), 0, Nclass, dtype=jnp.int32)

    out = cat_model_forward(teacher_logit, target, weights, iscale, temp, block_b=128)
    out = jax.block_until_ready(out)

    ref = _reference_forward(teacher_logit, target, weights, iscale, temp)
    assert out.shape == (B, Nclass)
    assert jnp.allclose(out, ref, atol=1e-5, rtol=1e-5), float(jnp.max(jnp.abs(out - ref)))

    print("KERNEL_OK")
</pallas_src>

<mosaic_0001>
module attributes {stable_mosaic.version = 11 : i64} {
  func.func @_cat_kernel(%arg0: i32, %arg1: memref<10x128xf32, #tpu.memory_space<vmem>>, %arg2: memref<1x128xi32, #tpu.memory_space<vmem>>, %arg3: memref<10x100xf32, #tpu.memory_space<vmem>>, %arg4: memref<100x10xf32, #tpu.memory_space<vmem>>, %arg5: memref<100x1xi32, #tpu.memory_space<vmem>>, %arg6: memref<10x128xf32, #tpu.memory_space<vmem>>) attributes {dimension_semantics = [#tpu.dimension_semantics<parallel>], iteration_bounds = array<i64: 3>, scalar_prefetch = 0 : i64, scratch_operands = 0 : i64, tpu.core_type = #tpu.core_type<tc>, window_params = [{transform_indices = @transform_0, window_bounds = array<i64: 10, 128>}, {transform_indices = @transform_1, window_bounds = array<i64: 1, 128>}, {pipeline_mode = #tpu.pipeline_mode<synchronous>, transform_indices = @transform_2, window_bounds = array<i64: 10, 100>}, {pipeline_mode = #tpu.pipeline_mode<synchronous>, transform_indices = @transform_3, window_bounds = array<i64: 100, 10>}, {pipeline_mode = #tpu.pipeline_mode<synchronous>, transform_indices = @transform_4, window_bounds = array<i64: 100, 1>}, {transform_indices = @transform_5, window_bounds = array<i64: 10, 128>}]} {
    %c0 = arith.constant 0 : index
    %c0_0 = arith.constant 0 : index
    %0 = vector.load %arg1[%c0, %c0_0] : memref<10x128xf32, #tpu.memory_space<vmem>>, vector<10x128xf32>
    %cst = arith.constant 1.000000e+00 : f32
    %1 = vector.broadcast %cst : f32 to vector<10x128xf32>
    %2 = arith.mulf %0, %1 : vector<10x128xf32>
    %cst_1 = arith.constant dense<0xFF800000> : vector<128xf32>
    %3 = vector.multi_reduction <maximumf>, %2, %cst_1 [0] : vector<10x128xf32> to vector<128xf32>
    %4 = vector.shape_cast %3 : vector<128xf32> to vector<1x128xf32>
    %5 = vector.broadcast %4 : vector<1x128xf32> to vector<10x128xf32>
    %6 = arith.subf %2, %5 : vector<10x128xf32>
    %7 = math.exp %6 : vector<10x128xf32>
    %cst_2 = arith.constant dense<0.000000e+00> : vector<128xf32>
    %8 = vector.multi_reduction <add>, %7, %cst_2 [0] : vector<10x128xf32> to vector<128xf32>
    %9 = vector.shape_cast %8 : vector<128xf32> to vector<1x128xf32>
    %10 = vector.broadcast %9 : vector<1x128xf32> to vector<10x128xf32>
    %11 = arith.divf %7, %10 : vector<10x128xf32>
    %c0_3 = arith.constant 0 : index
    %c0_4 = arith.constant 0 : index
    %12 = vector.load %arg4[%c0_3, %c0_4] : memref<100x10xf32, #tpu.memory_space<vmem>>, vector<100x10xf32>
    %cst_5 = arith.constant dense<0.000000e+00> : vector<100x128xf32>
    %13 = tpu.matmul %12, %11, %cst_5 {dimension_numbers = #tpu.dot_dimension_numbers<[1], [0], [0], [1], [0, 0, 1, 1], [], []>} : vector<100x10xf32>, vector<10x128xf32>, vector<100x128xf32> -> vector<100x128xf32>
    %c0_6 = arith.constant 0 : index
    %c0_7 = arith.constant 0 : index
    %14 = vector.load %arg5[%c0_6, %c0_7] : memref<100x1xi32, #tpu.memory_space<vmem>>, vector<100x1xi32>
    %c0_8 = arith.constant 0 : index
    %c0_9 = arith.constant 0 : index
    %15 = vector.load %arg2[%c0_8, %c0_9] : memref<1x128xi32, #tpu.memory_space<vmem>>, vector<1x128xi32>
    %16 = vector.broadcast %14 : vector<100x1xi32> to vector<100x128xi32>
    %17 = vector.broadcast %15 : vector<1x128xi32> to vector<100x128xi32>
    %18 = arith.cmpi eq, %16, %17 : vector<100x128xi32>
    %cst_10 = arith.constant 0.000000e+00 : f32
    %19 = vector.broadcast %cst_10 : f32 to vector<100x128xf32>
    %20 = arith.select %18, %13, %19 : vector<100x128xi1>, vector<100x128xf32>
    %c0_11 = arith.constant 0 : index
    %c0_12 = arith.constant 0 : index
    %21 = vector.load %arg3[%c0_11, %c0_12] : memref<10x100xf32, #tpu.memory_space<vmem>>, vector<10x100xf32>
    %cst_13 = arith.constant dense<0.000000e+00> : vector<10x128xf32>
    %22 = tpu.matmul %21, %20, %cst_13 {dimension_numbers = #tpu.dot_dimension_numbers<[1], [0], [0], [1], [0, 0, 1, 1], [], []>} : vector<10x100xf32>, vector<100x128xf32>, vector<10x128xf32> -> vector<10x128xf32>
    %c0_14 = arith.constant 0 : index
    %c0_15 = arith.constant 0 : index
    %23 = vector.load %arg6[%c0_14, %c0_15] : memref<10x128xf32, #tpu.memory_space<vmem>>, vector<10x128xf32>
    tpu.vector_store %arg6[%c0_14, %c0_15], %22 {strides = array<i32>} : memref<10x128xf32, #tpu.memory_space<vmem>>, vector<10x128xf32>,
    return
  }
  func.func @transform_0(%arg0: i32) -> (i32, i32) {
    %c0_i32 = arith.constant 0 : i32
    %c0_i32_0 = arith.constant 0 : i32
    return %c0_i32, %arg0 : i32, i32
  }
  func.func @transform_1(%arg0: i32) -> (i32, i32) {
    %c0_i32 = arith.constant 0 : i32
    %c0_i32_0 = arith.constant 0 : i32
    return %c0_i32, %arg0 : i32, i32
  }
  func.func @transform_2(%arg0: i32) -> (i32, i32) {
    %c0_i32 = arith.constant 0 : i32
    %c0_i32_0 = arith.constant 0 : i32
    %c0_i32_1 = arith.constant 0 : i32
    return %c0_i32, %c0_i32_0 : i32, i32
  }
  func.func @transform_3(%arg0: i32) -> (i32, i32) {
    %c0_i32 = arith.constant 0 : i32
    %c0_i32_0 = arith.constant 0 : i32
    %c0_i32_1 = arith.constant 0 : i32
    return %c0_i32, %c0_i32_0 : i32, i32
  }
  func.func @transform_4(%arg0: i32) -> (i32, i32) {
    %c0_i32 = arith.constant 0 : i32
    %c0_i32_0 = arith.constant 0 : i32
    %c0_i32_1 = arith.constant 0 : i32
    return %c0_i32, %c0_i32_0 : i32, i32
  }
  func.func @transform_5(%arg0: i32) -> (i32, i32) {
    %c0_i32 = arith.constant 0 : i32
    %c0_i32_0 = arith.constant 0 : i32
    return %c0_i32, %arg0 : i32, i32
  }
}

</mosaic_0001>

<llo_original>
// kernel: tpu_custom_call.1
$region0: #{tpu_custom_call.1}
  #allocation0 [shape = 'u32[]', space=smem, size = 0x4, offset = 0x4, fixed_abs, tag = 'smem constant byte address 0x4 - core index']
  #allocation1 [shape = 'u32[72,128]{1,0:T(1,128)}', space=vmem, size = 0x9000, scoped, tag = 'internal scratch']
  %s0 = inlined_call_operand.vmem [shape: f32[10,384], index: 0, kind: input, shape index: {}]
  %s1 = inlined_call_operand.vmem [shape: s32[1,384], index: 1, kind: input, shape index: {}]
  %s2 = inlined_call_operand.vmem [shape: f32[10,100], index: 2, kind: input, shape index: {}]
  %s3 = inlined_call_operand.vmem [shape: f32[100,10], index: 3, kind: input, shape index: {}]
  %s4 = inlined_call_operand.vmem [shape: s32[100,1], index: 4, kind: input, shape index: {}]
  %s5 = inlined_call_operand.hbm [shape: f32[10,384], index: 5, kind: output, shape index: {}]
  %s6 = sld [smem:[#allocation0]]
  $region91: #{tpu_custom_call.1} parent=0
    _
  %s8 = ssub.s32 1, %s6
  %s9 = scalar_select 0, %s8, %s6
  $region1: #{tpu_custom_call.1} parent=0
    #allocation2 [shape = 'u8[16384]{0}', space=vmem, size = 0x4000, scoped, tag = 'input window, operand 0']
    #allocation3 [shape = 'u8[16384]{0}', space=vmem, size = 0x4000, scoped, tag = 'output window, operand 0']
    #allocation4 [shape = 's32[2]{0}', space=sflag, size = 0x8, scoped, tag = 'scoped memory for tpu_custom_call.1']
    %10 = vsyncpa [#allocation4], 0
    %s11 = scalar_lea.sflag [#allocation4], 1
    %12 = vsyncpa %s11, 0
    loop: start=0, step=1, limit=5
    $region2: #{tpu_custom_call.1} parent=1 // loop_pre_header
      _
    $region3: #{tpu_custom_call.1} parent=1 // loop_header
      %s14 = sphi 0, %s18
      %p15 = scmp.ge.s32.totalorder %s14, 5
      %s24 = sphi 0, %s26
      %s27 = sphi 0, %s24
      %s28 = sphi 0, %s27
      %s44 = sphi 0, %s28
      %s50 = sphi 0, %s52
      %s53 = sphi 0, %s50
      %s54 = sphi 0, %s53
      %s70 = sphi 0, %s54
      %s74 = sphi 0, %s74
      %s76 = sphi 0, %s74
      %s77 = sphi 0, %s76
      %s91 = sphi 0, %s77
      %s95 = sphi 0, %s95
      %s97 = sphi 0, %s95
      %s98 = sphi 0, %s97
      %s112 = sphi 0, %s98
      %s116 = sphi 0, %s116
      %s118 = sphi 0, %s116
      %s119 = sphi 0, %s118
      %s133 = sphi 0, %s119
      %s139 = sphi 0, %s141
      %s142 = sphi 0, %s139
      %s143 = sphi 0, %s142
      %s159 = sphi 0, %s143
    $region4: #{tpu_custom_call.1} parent=1 // loop_header_branch
      %17 = sbr.rel (%p15) target = $region8
    $region5: #{tpu_custom_call.1} parent=1 // loop_body
      %s19 = ssub.s32 %s14, 1
      %s20 = ssub.s32 %s14, 2
      %s21 = sadd.s32 %s14, 1
      %s22 = ssub.s32 %s14, %s21
      %p23 = scmp.eq.s32.totalorder %s22, 0
      %s25 = sadd.s32 %s24, 1
      %s26 = scalar_select %p23, %s24, %s25
      %p29 = pneg %p23
      %p30 = scmp.eq.s32.totalorder %s14, 2
      %p31 = por %p29, %p30
      %p32 = scmp.ne.s32.totalorder %s24, %s27
      %p33 = scmp.eq.s32.totalorder %s14, 0
      %p34 = por %p32, %p33
      %p35 = scmp.ne.s32.totalorder %s24, %s27
      %p36 = scmp.eq.s32.totalorder %s19, 2
      %p37 = por %p35, %p36
      %p38 = scmp.ne.s32.totalorder %s27, %s28
      %p39 = scmp.eq.s32.totalorder %s19, 0
      %p40 = por %p38, %p39
      %p41 = scmp.ne.s32.totalorder %s27, %s28
      %p42 = scmp.eq.s32.totalorder %s20, 2
      %p43 = por %p41, %p42
      %p45 = scmp.ne.s32.totalorder %s28, %s44
      %p46 = scmp.eq.s32.totalorder %s20, 0
      %p47 = por %p45, %p46
      %s48 = ssub.s32 %s14, %s21
      %p49 = scmp.eq.s32.totalorder %s48, 0
      %s51 = sadd.s32 %s50, 1
      %s52 = scalar_select %p49, %s50, %s51
      %p55 = pneg %p49
      %p56 = scmp.eq.s32.totalorder %s14, 2
      %p57 = por %p55, %p56
      %p58 = scmp.ne.s32.totalorder %s50, %s53
      %p59 = scmp.eq.s32.totalorder %s14, 0
      %p60 = por %p58, %p59
      %p61 = scmp.ne.s32.totalorder %s50, %s53
      %p62 = scmp.eq.s32.totalorder %s19, 2
      %p63 = por %p61, %p62
      %p64 = scmp.ne.s32.totalorder %s53, %s54
      %p65 = scmp.eq.s32.totalorder %s19, 0
      %p66 = por %p64, %p65
      %p67 = scmp.ne.s32.totalorder %s53, %s54
      %p68 = scmp.eq.s32.totalorder %s20, 2
      %p69 = por %p67, %p68
      %p71 = scmp.ne.s32.totalorder %s54, %s70
      %p72 = scmp.eq.s32.totalorder %s20, 0
      %p73 = por %p71, %p72
      %s75 = sadd.s32 %s74, 1
      %p78 = scmp.eq.s32.totalorder %s14, 2
      %p79 = scmp.ne.s32.totalorder %s74, %s76
      %p80 = scmp.eq.s32.totalorder %s14, 0
      %p81 = por %p79, %p80
      %p82 = scmp.ne.s32.totalorder %s74, %s76
      %p83 = scmp.eq.s32.totalorder %s19, 2
      %p84 = por %p82, %p83
      %p85 = scmp.ne.s32.totalorder %s76, %s77
      %p86 = scmp.eq.s32.totalorder %s19, 0
      %p87 = por %p85, %p86
      %p88 = scmp.ne.s32.totalorder %s76, %s77
      %p89 = scmp.eq.s32.totalorder %s20, 2
      %p90 = por %p88, %p89
      %p92 = scmp.ne.s32.totalorder %s77, %s91
      %p93 = scmp.eq.s32.totalorder %s20, 0
      %p94 = por %p92, %p93
      %s96 = sadd.s32 %s95, 1
      %p99 = scmp.eq.s32.totalorder %s14, 2
      %p100 = scmp.ne.s32.totalorder %s95, %s97
      %p101 = scmp.eq.s32.totalorder %s14, 0
      %p102 = por %p100, %p101
      %p103 = scmp.ne.s32.totalorder %s95, %s97
      %p104 = scmp.eq.s32.totalorder %s19, 2
      %p105 = por %p103, %p104
      %p106 = scmp.ne.s32.totalorder %s97, %s98
      %p107 = scmp.eq.s32.totalorder %s19, 0
      %p108 = por %p106, %p107
      %p109 = scmp.ne.s32.totalorder %s97, %s98
      %p110 = scmp.eq.s32.totalorder %s20, 2
      %p111 = por %p109, %p110
      %p113 = scmp.ne.s32.totalorder %s98, %s112
      %p114 = scmp.eq.s32.totalorder %s20, 0
      %p115 = por %p113, %p114
      %s117 = sadd.s32 %s116, 1
      %p120 = scmp.eq.s32.totalorder %s14, 2
      %p121 = scmp.ne.s32.totalorder %s116, %s118
      %p122 = scmp.eq.s32.totalorder %s14, 0
      %p123 = por %p121, %p122
      %p124 = scmp.ne.s32.totalorder %s116, %s118
      %p125 = scmp.eq.s32.totalorder %s19, 2
      %p126 = por %p124, %p125
      %p127 = scmp.ne.s32.totalorder %s118, %s119
      %p128 = scmp.eq.s32.totalorder %s19, 0
      %p129 = por %p127, %p128
      %p130 = scmp.ne.s32.totalorder %s118, %s119
      %p131 = scmp.eq.s32.totalorder %s20, 2
      %p132 = por %p130, %p131
      %p134 = scmp.ne.s32.totalorder %s119, %s133
      %p135 = scmp.eq.s32.totalorder %s20, 0
      %p136 = por %p134, %p135
      %s137 = ssub.s32 %s14, %s21
      %p138 = scmp.eq.s32.totalorder %s137, 0
      %s140 = sadd.s32 %s139, 1
      %s141 = scalar_select %p138, %s139, %s140
      %p144 = pneg %p138
      %p145 = scmp.eq.s32.totalorder %s14, 2
      %p146 = por %p144, %p145
      %p147 = scmp.ne.s32.totalorder %s139, %s142
      %p148 = scmp.eq.s32.totalorder %s14, 0
      %p149 = por %p147, %p148
      %p150 = scmp.ne.s32.totalorder %s139, %s142
      %p151 = scmp.eq.s32.totalorder %s19, 2
      %p152 = por %p150, %p151
      %p153 = scmp.ne.s32.totalorder %s142, %s143
      %p154 = scmp.eq.s32.totalorder %s19, 0
      %p155 = por %p153, %p154
      %p156 = scmp.ne.s32.totalorder %s142, %s143
      %p157 = scmp.eq.s32.totalorder %s20, 2
      %p158 = por %p156, %p157
      %p160 = scmp.ne.s32.totalorder %s143, %s159
      %p161 = scmp.eq.s32.totalorder %s20, 0
      %p162 = por %p160, %p161
      %p163 = scmp.le.s32.totalorder 1, %s14
      %p164 = scmp.lt.s32.totalorder %s14, 4
      %p165 = pnand %p163, %p164
      %p166 = pneg %p165
      // Predicated region
      $region9: #{tpu_custom_call.1} parent=5 // pred_check
        _
      $region10: #{tpu_custom_call.1} parent=5 // pred_check_branch
        %168 = sbr.rel (%p165) target = $region12
      $region11: #{tpu_custom_call.1} parent=5 // pred_region
        %s169 = ssub.s32 %s14, 1
        // Predicated region
        $region13: #{tpu_custom_call.1} parent=11 // pred_check
          %p170 = pneg %p87
        $region14: #{tpu_custom_call.1} parent=11 // pred_check_branch
          %172 = sbr.rel (%p170) target = $region16
        $region15: #{tpu_custom_call.1} parent=11 // pred_region
          _
        $region16: #{tpu_custom_call.1} parent=11 // pred_fallthru
          _
        // Predicated region
        $region17: #{tpu_custom_call.1} parent=11 // pred_check
          %p173 = pneg %p108
        $region18: #{tpu_custom_call.1} parent=11 // pred_check_branch
          %175 = sbr.rel (%p173) target = $region20
        $region19: #{tpu_custom_call.1} parent=11 // pred_region
          _
        $region20: #{tpu_custom_call.1} parent=11 // pred_fallthru
          _
        // Predicated region
        $region21: #{tpu_custom_call.1} parent=11 // pred_check
          %p176 = pneg %p129
        $region22: #{tpu_custom_call.1} parent=11 // pred_check_branch
          %178 = sbr.rel (%p176) target = $region24
        $region23: #{tpu_custom_call.1} parent=11 // pred_region
          _
        $region24: #{tpu_custom_call.1} parent=11 // pred_fallthru
          _
      $region12: #{tpu_custom_call.1} parent=5 // pred_fallthru
        _
      %p179 = scmp.lt.s32.totalorder %s14, 3
      // Predicated region
      $region25: #{tpu_custom_call.1} parent=5 // pred_check
        %p180 = pneg %p179
      $region26: #{tpu_custom_call.1} parent=5 // pred_check_branch
        %182 = sbr.rel (%p180) target = $region28
      $region27: #{tpu_custom_call.1} parent=5 // pred_region
        // Predicated region
        $region29: #{tpu_custom_call.1} parent=27 // pred_check
          %p183 = pneg %p34
        $region30: #{tpu_custom_call.1} parent=27 // pred_check_branch
          %185 = sbr.rel (%p183) target = $region32
        $region31: #{tpu_custom_call.1} parent=27 // pred_region
          %s186 = sand.u32 %s24, 1
          %s187 = sand.u32 %s24, 1
          %s188 = smul.addr %s187, 16
          %s189 = scalar_lea.vmem [#allocation2], %s188
          %s190 = smul.addr %s14, 8
          %s191 = scalar_lea.vmem %s0, %s190
          // Predicated region
          $region33: #{tpu_custom_call.1} parent=31 // pred_check
            _
          $region34: #{tpu_custom_call.1} parent=31 // pred_check_branch
            %193 = sbr.rel (0) target = $region36
          $region35: #{tpu_custom_call.1} parent=31 // pred_region
            // Predicated region
            $region37: #{tpu_custom_call.1} parent=35 // pred_check
              _
            $region38: #{tpu_custom_call.1} parent=35 // pred_check_branch
              %195 = sbr.rel (0) target = $region40
            $region39: #{tpu_custom_call.1} parent=35 // pred_region
              // Predicated region
              $region52: #{tpu_custom_call.1} parent=39 // pred_check
                _
              $region53: #{tpu_custom_call.1} parent=39 // pred_check_branch
                %213 = sbr.rel (0) target = $region55
              $region54: #{tpu_custom_call.1} parent=39 // pred_region
                loop: start=0, step=1, limit=1
                $region56: #{tpu_custom_call.1} parent=54 // loop_pre_header
                  _
                $region57: #{tpu_custom_call.1} parent=54 // loop_header
                  %s215 = sphi 0, %s219
                  %p216 = scmp.ge.s32.totalorder %s215, 1
                  %s220 = sphi %s191, %s191
                  %s221 = sphi %s189, %s189
                $region58: #{tpu_custom_call.1} parent=54 // loop_header_branch
                  %218 = sbr.rel (%p216) target = $region62
                $region59: #{tpu_custom_call.1} parent=54 // loop_body
                  %v222 = vld [vmem:[%s220] sm:$0xff]
                  %223 = vst [vmem:[%s221] sm:$0xff] %v222
                  %v224 = vld [vmem:[%s220 + $0x18] sm:$0xff]
                  %225 = vst [vmem:[%s221 + $0x8] sm:$0xff] %v224
                $region60: #{tpu_custom_call.1} parent=54 // loop_footer
                  %s219 = sadd.s32 1, %s215
                $region61: #{tpu_custom_call.1} parent=54 // loop_footer_branch
                  %214 = sbr.rel target = $region57
                $region62: #{tpu_custom_call.1} parent=54 // loop_exit
                  _
              $region55: #{tpu_custom_call.1} parent=39 // pred_fallthru
                _
              // Predicated region
              $region63: #{tpu_custom_call.1} parent=39 // pred_check
                _
              $region64: #{tpu_custom_call.1} parent=39 // pred_check_branch
                %227 = sbr.rel target = $region66
              $region65: #{tpu_custom_call.1} parent=39 // pred_region
                _
              $region66: #{tpu_custom_call.1} parent=39 // pred_fallthru
                _
            $region40: #{tpu_custom_call.1} parent=35 // pred_fallthru
              _
            // Predicated region
            $region41: #{tpu_custom_call.1} parent=35 // pred_check
              _
            $region42: #{tpu_custom_call.1} parent=35 // pred_check_branch
              %197 = sbr.rel target = $region44
            $region43: #{tpu_custom_call.1} parent=35 // pred_region
              %s199 = ssub.s32 256, 1
              loop: start=0, step=1, limit=1
              $region45: #{tpu_custom_call.1} parent=43 // loop_pre_header
                _
              $region46: #{tpu_custom_call.1} parent=43 // loop_header
                %s201 = sphi 0, %s205
                %p202 = scmp.ge.s32.totalorder %s201, 1
                %s206 = sphi %s191, %s191
                %s207 = sphi %s189, %s189
              $region47: #{tpu_custom_call.1} parent=43 // loop_header_branch
                %204 = sbr.rel (%p202) target = $region51
              $region48: #{tpu_custom_call.1} parent=43 // loop_body
                %v208 = vld [vmem:[%s206] sm:%s199]
                %209 = vst [vmem:[%s207] sm:%s199] %v208
                %v210 = vld [vmem:[%s206 + $0x18] sm:%s199]
                %211 = vst [vmem:[%s207 + $0x8] sm:%s199] %v210
              $region49: #{tpu_custom_call.1} parent=43 // loop_footer
                %s205 = sadd.s32 1, %s201
              $region50: #{tpu_custom_call.1} parent=43 // loop_footer_branch
                %200 = sbr.rel target = $region46
              $region51: #{tpu_custom_call.1} parent=43 // loop_exit
                _
            $region44: #{tpu_custom_call.1} parent=35 // pred_fallthru
              _
          $region36: #{tpu_custom_call.1} parent=31 // pred_fallthru
            _
          %228 = vnop
        $region32: #{tpu_custom_call.1} parent=27 // pred_fallthru
          _
        // Predicated region
        $region67: #{tpu_custom_call.1} parent=27 // pred_check
          %p229 = pneg %p60
        $region68: #{tpu_custom_call.1} parent=27 // pred_check_branch
          %231 = sbr.rel (%p229) target = $region70
        $region69: #{tpu_custom_call.1} parent=27 // pred_region
          %p232 = scmp.lt.s32.totalorder %s14, 2
          %s233 = scalar_select %p232, %s14, 2
          %s234 = scalar_lea.vmem %s1, %s233
        $region70: #{tpu_custom_call.1} parent=27 // pred_fallthru
          _
      $region28: #{tpu_custom_call.1} parent=5 // pred_fallthru
        _
      %p235 = scmp.le.s32.totalorder 1, %s14
      %p236 = scmp.lt.s32.totalorder %s14, 4
      %p237 = pnand %p235, %p236
      %p238 = pneg %p237
      // Predicated region
      $region71: #{tpu_custom_call.1} parent=5 // pred_check
        _
      $region72: #{tpu_custom_call.1} parent=5 // pred_check_branch
        %240 = sbr.rel (%p237) target = $region74
      $region73: #{tpu_custom_call.1} parent=5 // pred_region
        %s241 = ssub.s32 %s14, 1
        %s242 = sand.u32 %s27, 1
        %s243 = sand.u32 %s27, 1
        %s244 = smul.addr %s243, 16
        %s245 = scalar_lea.vmem [#allocation2], %s244
        // Predicated region
        $region75: #{tpu_custom_call.1} parent=73 // pred_check
          %p246 = pneg %p40
        $region76: #{tpu_custom_call.1} parent=73 // pred_check_branch
          %248 = sbr.rel (%p246) target = $region78
        $region77: #{tpu_custom_call.1} parent=73 // pred_region
          _
        $region78: #{tpu_custom_call.1} parent=73 // pred_fallthru
          _
        %s249 = sand.u32 %s27, 1
        %s250 = sand.u32 %s27, 1
        %s251 = smul.addr %s250, 16
        %s252 = scalar_lea.vmem [#allocation2], %s251
        %p253 = pneg %p40
        %p254 = pneg %p37
        %p255 = scmp.lt.s32.totalorder %s19, 2
        %s256 = scalar_select %p255, %s19, 2
        %s257 = scalar_lea.vmem %s1, %s256
        %p258 = pneg %p66
        %p259 = pneg %p63
        %p260 = pneg %p87
        %p261 = pneg %p84
        %p262 = pneg %p108
        %p263 = pneg %p105
        %p264 = pneg %p129
        %p265 = pneg %p126
        %p266 = pneg %p155
        %p267 = pneg %p152
        %s268 = sand.u32 %s142, 1
        %s269 = scalar_lea.sflag [#allocation4], %s268
        %s270 = sand.u32 %s142, 1
        %s271 = smul.addr %s270, 16
        %s272 = scalar_lea.vmem [#allocation3], %s271
        %p273 = scmp.lt.s32.totalorder %s19, 2
        %s274 = scalar_select %p273, %s19, 2
        %s275 = scalar_lea.vmem %s1, %s274
        %v276 = vld [vmem:[%s245] sm:$0xff]
        %v277 = vld [vmem:[%s245 + $0x8] sm:$0x3]
        %vm278 = vcmask 1041408
        %v279 = vsel %vm278, %v277, -inf
        %v280 = vmax.f32 %v276, %v279
        %v281 = vrot.slane %v280, 4
        %v282 = vmax.f32 %v280, %v281
        %v283 = vrot.slane %v282, 2
        %v284 = vmax.f32 %v282, %v283
        %v285 = vrot.slane %v284, 1
        %v286 = vmax.f32 %v284, %v285
        %v287 = vsub.f32 %v276, %v286
        %v288 = vsub.f32 %v277, %v286
        %v289 = vmul.f32 %v287, 1.442695
        %v290 = vpow.pop %v289
        %v291 = vmul.f32 %v288, 1.442695
        %v292 = vpow.pop %v291
        %v293 = vsel %vm278, %v292, 0.0
        %v294 = vadd.f32 %v290, %v293
        %v295 = vrot.slane %v294, 4
        %v296 = vadd.f32 %v294, %v295
        %v297 = vrot.slane %v296, 2
        %v298 = vadd.f32 %v296, %v297
        %v299 = vrot.slane %v298, 1
        %v300 = vadd.f32 %v298, %v299
        %v301 = vrcp.pop %v300
        %v302 = vmul.f32 %v300, %v301
        %v303 = vsub.f32 1.0, %v302
        %v304 = vmul.f32 %v301, %v303
        %v305 = vadd.f32 %v301, %v304
        %vm306 = vweird.f32 %v300
        %vm307 = vweird.f32 %v301
        %vm308 = vmor %vm306, %vm307
        %v309 = vsel %vm308, %v301, %v305
        %v310 = vand.u32 2147483647, %v300
        %vm311 = vcmp.eq.f32.partialorder %v310, 8.507059e+37
        %v312 = vand.u32 %v300, 2147483648
        %v313 = vor.u32 1.1754944e-38, %v312
        %v314 = vsel %vm311, %v313, %v309
        %v315 = vmul.f32 %v290, %v314
        %v316 = vmul.f32 %v292, %v314
        %v317 = vld [vmem:[%s3] sm:$0xff]
        %v318 = vld [vmem:[%s3 + $0x8] sm:$0xff]
        %v319 = vld [vmem:[%s3 + $0x10] sm:$0xff]
        %v320 = vld [vmem:[%s3 + $0x18] sm:$0xff]
        %v321 = vld [vmem:[%s3 + $0x20] sm:$0xff]
        %v322 = vld [vmem:[%s3 + $0x28] sm:$0xff]
        %v323 = vld [vmem:[%s3 + $0x30] sm:$0xff]
        %v324 = vld [vmem:[%s3 + $0x38] sm:$0xff]
        %v325 = vld [vmem:[%s3 + $0x40] sm:$0xff]
        %v326 = vld [vmem:[%s3 + $0x48] sm:$0xff]
        %v327 = vld [vmem:[%s3 + $0x50] sm:$0xff]
        %v328 = vld [vmem:[%s3 + $0x58] sm:$0xff]
        %v329 = vld [vmem:[%s3 + $0x60] sm:$0xf]
        %vm330 = vcmask 80896
        %v332 = vsel %vm330, %v317, 0
        %v335 = vsel %vm330, %v318, 0
        %v338 = vsel %vm330, %v319, 0
        %v341 = vsel %vm330, %v320, 0
        %v344 = vsel %vm330, %v321, 0
        %v347 = vsel %vm330, %v322, 0
        %v350 = vsel %vm330, %v323, 0
        %v353 = vsel %vm330, %v324, 0
        %v356 = vsel %vm330, %v325, 0
        %v359 = vsel %vm330, %v326, 0
        %v362 = vsel %vm330, %v327, 0
        %v365 = vsel %vm330, %v328, 0
        %v368 = vsel %vm330, %v329, 0
        %v371 = vsel %vm278, %v316, 0
        %373 = vmatpush.msra.mxu0 0.0
        %374 = vmatpush.msra.mxu0 0.0
        %375 = vmatpush.msra.mxu0 0.0
        %376 = vmatpush.msra.mxu0 0.0
        %377 = vmatpush.msra.mxu0 0.0
        %378 = vmatpush.msra.mxu0 0.0
        %379 = vmatpush.msra.mxu0 0.0
        %380 = vmatpush.msra.mxu0 0.0
        %381 = vmatpush.msra.mxu0 0.0
        %382 = vmatpush.msra.mxu0 0.0
        %383 = vmatpush.msra.mxu0 0.0
        %384 = vmatpush.msra.mxu0 0.0
        %385 = vmatpush.msra.mxu0 0.0
        %386 = vmatpush.msra.mxu0 0.0
        %387 = vmatpush.msra.mxu0 %v371
        %388 = vmatpush.msra.mxu0 %v315
        %389 = vmatmul.f32.gmra.mxu0 %v332
        %v390 = vpop.f32.mrf.mxu0
        %v391 = vadd.f32 0.0, %v390
        %392 = vmatmul.f32.gmra.mxu0 %v335
        %v393 = vpop.f32.mrf.mxu0
        %v394 = vadd.f32 0.0, %v393
        %395 = vmatmul.f32.gmra.mxu0 %v338
        %v396 = vpop.f32.mrf.mxu0
        %v397 = vadd.f32 0.0, %v396
        %398 = vmatmul.f32.gmra.mxu0 %v341
        %v399 = vpop.f32.mrf.mxu0
        %v400 = vadd.f32 0.0, %v399
        %401 = vmatmul.f32.gmra.mxu0 %v344
        %v402 = vpop.f32.mrf.mxu0
        %v403 = vadd.f32 0.0, %v402
        %404 = vmatmul.f32.gmra.mxu0 %v347
        %v405 = vpop.f32.mrf.mxu0
        %v406 = vadd.f32 0.0, %v405
        %407 = vmatmul.f32.gmra.mxu0 %v350
        %v408 = vpop.f32.mrf.mxu0
        %v409 = vadd.f32 0.0, %v408
        %410 = vmatmul.f32.gmra.mxu0 %v353
        %v411 = vpop.f32.mrf.mxu0
        %v412 = vadd.f32 0.0, %v411
        %413 = vmatmul.f32.gmra.mxu0 %v356
        %v414 = vpop.f32.mrf.mxu0
        %v415 = vadd.f32 0.0, %v414
        %416 = vmatmul.f32.gmra.mxu0 %v359
        %v417 = vpop.f32.mrf.mxu0
        %v418 = vadd.f32 0.0, %v417
        %419 = vmatmul.f32.gmra.mxu0 %v362
        %v420 = vpop.f32.mrf.mxu0
        %v421 = vadd.f32 0.0, %v420
        %422 = vmatmul.f32.gmra.mxu0 %v365
        %v423 = vpop.f32.mrf.mxu0
        %v424 = vadd.f32 0.0, %v423
        %425 = vmatmul.f32.gmra.mxu0 %v368
        %v426 = vpop.f32.mrf.mxu0
        %v427 = vadd.f32 0.0, %v426
        %428 = vdwg.mxu0
        %v429 = vld [vmem:[%s4] sm:$0xff]
        %v430 = vld [vmem:[%s4 + $0x8] sm:$0xff]
        %v431 = vld [vmem:[%s4 + $0x10] sm:$0xff]
        %v432 = vld [vmem:[%s4 + $0x18] sm:$0xff]
        %v433 = vld [vmem:[%s4 + $0x20] sm:$0xff]
        %v434 = vld [vmem:[%s4 + $0x28] sm:$0xff]
        %v435 = vld [vmem:[%s4 + $0x30] sm:$0xff]
        %v436 = vld [vmem:[%s4 + $0x38] sm:$0xff]
        %v437 = vld [vmem:[%s4 + $0x40] sm:$0xff]
        %v438 = vld [vmem:[%s4 + $0x48] sm:$0xff]
        %v439 = vld [vmem:[%s4 + $0x50] sm:$0xff]
        %v440 = vld [vmem:[%s4 + $0x58] sm:$0xff]
        %v441 = vld [vmem:[%s4 + $0x60] sm:$0xf]
        %v442 = vld [vmem:[%s275] sm:$0x1]
        %443 = vset.pattern.permute.xlu0 0
        %444 = vperm.xlu0 %443, %v429
        %v445 = vpop.permute.xlu0 %444
        %446 = vset.pattern.permute.xlu0 0
        %447 = vperm.xlu0 %446, %v430
        %v448 = vpop.permute.xlu0 %447
        %449 = vset.pattern.permute.xlu0 0
        %450 = vperm.xlu0 %449, %v431
        %v451 = vpop.permute.xlu0 %450
        %452 = vset.pattern.permute.xlu0 0
        %453 = vperm.xlu0 %452, %v432
        %v454 = vpop.permute.xlu0 %453
        %455 = vset.pattern.permute.xlu0 0
        %456 = vperm.xlu0 %455, %v433
        %v457 = vpop.permute.xlu0 %456
        %458 = vset.pattern.permute.xlu0 0
        %459 = vperm.xlu0 %458, %v434
        %v460 = vpop.permute.xlu0 %459
        %461 = vset.pattern.permute.xlu0 0
        %462 = vperm.xlu0 %461, %v435
        %v463 = vpop.permute.xlu0 %462
        %464 = vset.pattern.permute.xlu0 0
        %465 = vperm.xlu0 %464, %v436
        %v466 = vpop.permute.xlu0 %465
        %467 = vset.pattern.permute.xlu0 0
        %468 = vperm.xlu0 %467, %v437
        %v469 = vpop.permute.xlu0 %468
        %470 = vset.pattern.permute.xlu0 0
        %471 = vperm.xlu0 %470, %v438
        %v472 = vpop.permute.xlu0 %471
        %473 = vset.pattern.permute.xlu0 0
        %474 = vperm.xlu0 %473, %v439
        %v475 = vpop.permute.xlu0 %474
        %476 = vset.pattern.permute.xlu0 0
        %477 = vperm.xlu0 %476, %v440
        %v478 = vpop.permute.xlu0 %477
        %479 = vset.pattern.permute.xlu0 0
        %480 = vperm.xlu0 %479, %v441
        %v481 = vpop.permute.xlu0 %480
        %v482 = vperm.slane %v442, 0
        %vm483 = vcmp.eq.s32.totalorder %v445, %v482
        %vm484 = vcmp.eq.s32.totalorder %v448, %v482
        %vm485 = vcmp.eq.s32.totalorder %v451, %v482
        %vm486 = vcmp.eq.s32.totalorder %v454, %v482
        %vm487 = vcmp.eq.s32.totalorder %v457, %v482
        %vm488 = vcmp.eq.s32.totalorder %v460, %v482
        %vm489 = vcmp.eq.s32.totalorder %v463, %v482
        %vm490 = vcmp.eq.s32.totalorder %v466, %v482
        %vm491 = vcmp.eq.s32.totalorder %v469, %v482
        %vm492 = vcmp.eq.s32.totalorder %v472, %v482
        %vm493 = vcmp.eq.s32.totalorder %v475, %v482
        %vm494 = vcmp.eq.s32.totalorder %v478, %v482
        %vm495 = vcmp.eq.s32.totalorder %v481, %v482
        %v496 = vsel %vm483, %v391, 0.0
        %v497 = vsel %vm484, %v394, 0.0
        %v498 = vsel %vm485, %v397, 0.0
        %v499 = vsel %vm486, %v400, 0.0
        %v500 = vsel %vm487, %v403, 0.0
        %v501 = vsel %vm488, %v406, 0.0
        %v502 = vsel %vm489, %v409, 0.0
        %v503 = vsel %vm490, %v412, 0.0
        %v504 = vsel %vm491, %v415, 0.0
        %v505 = vsel %vm492, %v418, 0.0
        %v506 = vsel %vm493, %v421, 0.0
        %v507 = vsel %vm494, %v424, 0.0
        %v508 = vsel %vm495, %v427, 0.0
        %v509 = vld [vmem:[%s2] sm:$0xff]
        %v510 = vld [vmem:[%s2 + $0x8] sm:$0x3]
        %vm511 = vcmask 818176
        %v513 = vsel %vm511, %v509, 0
        %v516 = vsel %vm511, %v510, 0
        %vm518 = vcmask 1043456
        %v520 = vsel %vm518, %v508, 0
        %522 = vmatpush.msra.mxu0 0.0
        %523 = vmatpush.msra.mxu0 0.0
        %524 = vmatpush.msra.mxu0 0.0
        %525 = vmatpush.msra.mxu0 %v520
        %526 = vmatpush.msra.mxu0 %v507
        %527 = vmatpush.msra.mxu0 %v506
        %528 = vmatpush.msra.mxu0 %v505
        %529 = vmatpush.msra.mxu0 %v504
        %530 = vmatpush.msra.mxu0 %v503
        %531 = vmatpush.msra.mxu0 %v502
        %532 = vmatpush.msra.mxu0 %v501
        %533 = vmatpush.msra.mxu0 %v500
        %534 = vmatpush.msra.mxu0 %v499
        %535 = vmatpush.msra.mxu0 %v498
        %536 = vmatpush.msra.mxu0 %v497
        %537 = vmatpush.msra.mxu0 %v496
        %538 = vmatmul.f32.gmra.mxu0 %v513
        %v539 = vpop.f32.mrf.mxu0
        %v540 = vadd.f32 0.0, %v539
        %541 = vmatmul.f32.gmra.mxu0 %v516
        %v542 = vpop.f32.mrf.mxu0
        %v543 = vadd.f32 0.0, %v542
        %544 = vdwg.mxu0
        %545 = vst [vmem:[%s272] sm:$0xff] %v540
        %546 = vst [vmem:[%s272 + $0x8] sm:$0x3] %v543
        %s547 = sand.u32 %s142, 1
        %s548 = scalar_lea.sflag [#allocation4], %s547
        %s549 = sand.u32 %s142, 1
        %s550 = smul.addr %s549, 16
        %s551 = scalar_lea.vmem [#allocation3], %s550
        // Predicated region
        $region79: #{tpu_custom_call.1} parent=73 // pred_check
          %p552 = pneg %p152
        $region80: #{tpu_custom_call.1} parent=73 // pred_check_branch
          %554 = sbr.rel (%p552) target = $region82
        $region81: #{tpu_custom_call.1} parent=73 // pred_region
          %556 = vsyncadd %s548, 0
          %s557 = smul.addr %s19, 8
          %s558 = scalar_lea.hbm %s5, %s557
          %s559 = sshll.u32 %s551, 4
          %s560 = int_to_ptr.vmem [resolvable:$true] %s559
          %s561 = sshll.u32 %s558, 4
          %s562 = int_to_ptr.hbm [resolvable:$true] %s561
          %567 = dma.vmem_to_hbm [thread:$0]  %s560, 256, %s562, %s548, 128, 384, 8
        $region82: #{tpu_custom_call.1} parent=73 // pred_fallthru
          _
      $region74: #{tpu_custom_call.1} parent=5 // pred_fallthru
        _
      %p568 = scmp.le.s32.totalorder 2, %s14
      // Predicated region
      $region83: #{tpu_custom_call.1} parent=5 // pred_check
        %p569 = pneg %p568
      $region84: #{tpu_custom_call.1} parent=5 // pred_check_branch
        %571 = sbr.rel (%p569) target = $region86
      $region85: #{tpu_custom_call.1} parent=5 // pred_region
        %s572 = ssub.s32 %s14, 2
        // Predicated region
        $region87: #{tpu_custom_call.1} parent=85 // pred_check
          %p573 = pneg %p158
        $region88: #{tpu_custom_call.1} parent=85 // pred_check_branch
          %575 = sbr.rel (%p573) target = $region90
        $region89: #{tpu_custom_call.1} parent=85 // pred_region
          %s576 = sand.u32 %s143, 1
          %s577 = scalar_lea.sflag [#allocation4], %s576
          %s578 = sand.u32 %s143, 1
          %s579 = smul.addr %s578, 16
          %s580 = scalar_lea.vmem [#allocation3], %s579
          %582 = dma.done %s577, 256
        $region90: #{tpu_custom_call.1} parent=85 // pred_fallthru
          _
      $region86: #{tpu_custom_call.1} parent=5 // pred_fallthru
        _
    $region6: #{tpu_custom_call.1} parent=1 // loop_footer
      %s18 = sadd.s32 1, %s14
    $region7: #{tpu_custom_call.1} parent=1 // loop_footer_branch
      %13 = sbr.rel target = $region3
    $region8: #{tpu_custom_call.1} parent=1 // loop_exit
      _
    %583 = vsyncpa [#allocation4], 1
    %s584 = scalar_lea.sflag [#allocation4], 1
    %585 = vsyncpa %s584, 1

</llo_original>
